<compile_context>
chip_gen: v7x
topology: tpu7x:2x2x1
jax: 0.10.0
libtpu: 0.0.40
codegen_flags: <defaults>
</compile_context>

<pallas_src>
import math
import numpy as np
import jax
import jax.numpy as jnp
from jax.experimental import pallas as pl
from jax.experimental.pallas import tpu as pltpu

# ----------------------------- model hyper-params (small but consistent) ------------
RESOLUTION      = 256                 # -> n_latent = 2*log2(256) - 2 = 14
LATENT_SIZE     = 128                 # Z dim   (defaults are 512; scaled down)
DLATENT_SIZE    = 128                 # W dim
MAPPING_FMAPS   = 128
MAPPING_LAYERS  = 4
MAPPING_LR      = 0.01                # lr_mul for equalized learning rate
LRELU_SLOPE     = 0.2
GAIN            = math.sqrt(2.0)      # Amplify(2**0.5)
NUM_TARGET      = 10                  # TruncationTrick(num_target=10, threshold=1.0)
THRESHOLD       = 1.0
N_LATENT        = int(np.log2(RESOLUTION)) * 2 - 2
W_SCALE         = (1.0 / math.sqrt(LATENT_SIZE)) * MAPPING_LR   # he_std * lr_mul
W_GAIN          = W_SCALE * GAIN                                 # fused matmul scale
B_GAIN          = MAPPING_LR * GAIN                              # fused bias scale
D               = LATENT_SIZE         # all fmaps equal (as in the 512-everywhere default)
IDENTITY_TRUNC  = (THRESHOLD == 1.0)  # trace-time: truncation is an exact no-op
OUT_W           = D if IDENTITY_TRUNC else 2 * D                 # deduped kernel output width
BATCH           = 16


# ----------------------------- Pallas kernel ----------------------------------------
def mapping_kernel(z_ref, w_ref, b_ref, avg_ref, out_ref):
    """z_ref:   (TB, D)         latents tile
       w_ref:   (L, D, D)       weights stored as (in, out) i.e. torch weight.T
       b_ref:   (L, 1, D)       raw biases (lr_mul*GAIN folded in-kernel)
       avg_ref: (1, D)          avg_style buffer (unused when THRESHOLD == 1.0)
       out_ref: (TB, OUT_W)     deduplicated style output (1 or 2 distinct 128-lane slots)"""
    x = z_ref[...].astype(jnp.float32)

    # PixelwiseNormalization over the feature axis (rsqrt -> EUP).
    x = x * jax.lax.rsqrt(jnp.mean(x * x, axis=-1, keepdims=True) + 1e-8)

    # Mapping blocks: fused equalized-LR linear + bias + amplify, then leaky relu.
    for l in range(MAPPING_LAYERS):           # static unroll, L is small
        y = (jnp.dot(x, w_ref[l], preferred_element_type=jnp.float32) * W_GAIN
             + b_ref[l] * B_GAIN)
        x = jnp.maximum(y, LRELU_SLOPE * y)   # leaky relu (slope < 1)

    if IDENTITY_TRUNC:
        # coef == 1.0 for every style slot -> truncation is the identity; all 14 slots
        # are bit-identical, so write x once (wrapper broadcasts to (N, n_latent, D)).
        out_ref[...] = x.astype(out_ref.dtype)
    else:
        # Two distinct coef values: slot 0 = blended (layers < NUM_TARGET), slot 1 = x.
        avg = avg_ref[...]                    # (1, D), broadcasts over rows
        lo = avg + (x - avg) * THRESHOLD
        out_ref[:, 0:D] = lo.astype(out_ref.dtype)
        out_ref[:, D:2 * D] = x.astype(out_ref.dtype)


# ----------------------------- wrapper -----------------------------------------------
def _num_tensorcores():
    """2 TensorCores per chip on v7x; 1 on v5e/v6e. String check keeps this safe."""
    try:
        kind = jax.devices()[0].device_kind.lower()
    except Exception:
        return 1
    return 2 if "v7" in kind else 1


def _pick_tile_b(n, num_tc):
    """Largest batch tile <= 128 (keeps the layer chain vreg-resident), multiple of 8,
    dividing n.  Only force >=num_tc grid steps when there are >=2 TensorCores; on
    single-TC chips extra grid steps are pure sequential overhead."""
    cap = 128
    if num_tc >= 2 and n >= 2 * 8:
        cap = min(cap, max(8, (n // num_tc) // 8 * 8))
    if n <= cap:
        return n
    for tb in range((cap // 8) * 8, 0, -8):
        if n % tb == 0:
            return tb
    return n


def generator_mapping(z, weights, biases, avg_style, *, tile_b=None):
    """z: (N, D) f32;  weights: (L, D, D) f32 (in,out);  biases: (L, 1, D);  avg: (1, D).
    Returns dlatents (N, n_latent, D) f32."""
    N, _ = z.shape
    if tile_b is None:
        tile_b = _pick_tile_b(N, _num_tensorcores())
    assert N % tile_b == 0
    grid = (N // tile_b,)

    flops = 2 * N * MAPPING_LAYERS * D * D
    bytes_accessed = (
        N * D * 4                                 # z in
        + MAPPING_LAYERS * D * D * 4              # weights
        + MAPPING_LAYERS * D * 4 + D * 4          # biases + avg_style
        + N * OUT_W * 4                           # deduplicated output writeback
    )

    flat = pl.pallas_call(
        mapping_kernel,
        out_shape=jax.ShapeDtypeStruct((N, OUT_W), jnp.float32),
        grid_spec=pltpu.PrefetchScalarGridSpec(
            num_scalar_prefetch=0,
            grid=grid,
            in_specs=[
                pl.BlockSpec((tile_b, D), lambda i: (i, 0)),
                pl.BlockSpec((MAPPING_LAYERS, D, D), lambda i: (0, 0, 0)),
                pl.BlockSpec((MAPPING_LAYERS, 1, D), lambda i: (0, 0, 0)),
                pl.BlockSpec((1, D), lambda i: (0, 0)),
            ],
            out_specs=pl.BlockSpec((tile_b, OUT_W), lambda i: (i, 0)),
        ),
        compiler_params=pltpu.CompilerParams(dimension_semantics=("parallel",)),
        cost_estimate=pl.CostEstimate(
            flops=flops, transcendentals=N, bytes_accessed=bytes_accessed),
    )(z, weights, biases, avg_style)

    if IDENTITY_TRUNC:
        # All n_latent style slots are identical (coef == 1.0 everywhere): broadcast.
        return jnp.broadcast_to(flat[:, None, :], (N, N_LATENT, D))
    # General case: pick per-slot between the blended (lo) and untouched (hi) styles.
    lo = flat[:, None, 0:D]
    hi = flat[:, None, D:2 * D]
    sel = (jnp.arange(N_LATENT)[None, :, None] < NUM_TARGET)
    return jnp.where(sel, lo, hi)


# ----------------------------- pure-JAX reference (for sanity) ----------------------
def reference(z, weights, biases, avg_style):
    x = z * jax.lax.rsqrt(jnp.mean(z * z, axis=-1, keepdims=True) + 1e-8)
    for l in range(MAPPING_LAYERS):
        y = (x @ weights[l]) * W_SCALE
        y = (y + biases[l] * MAPPING_LR) * GAIN
        x = jnp.where(y >= 0.0, y, LRELU_SLOPE * y)
    coef = jnp.where(jnp.arange(N_LATENT)[None, :, None] < NUM_TARGET, THRESHOLD, 1.0)
    avg = avg_style[None, :, :]
    return avg + (x[:, None, :] - avg) * coef


if __name__ == "__main__":
    key = jax.random.PRNGKey(0)
    kz, kw = jax.random.split(key)

    # Deterministic parameter init (matches StyleGAN equalized-LR convention):
    #   torch weight ~ N(0, (1/lr_mul)^2), applied with runtime scale he_std*lr_mul.
    # Weights are stored pre-transposed to (in_fmaps, out_fmaps) so the kernel does x @ w.
    latents_in = jax.random.normal(kz, (BATCH, LATENT_SIZE), dtype=jnp.float32)
    weights = jax.random.normal(kw, (MAPPING_LAYERS, D, D), dtype=jnp.float32) * (1.0 / MAPPING_LR)
    biases = jnp.zeros((MAPPING_LAYERS, 1, D), dtype=jnp.float32)        # torch zeros_ init
    avg_style = jnp.zeros((1, D), dtype=jnp.float32)                     # buffer init to zeros

    out = generator_mapping(latents_in, weights, biases, avg_style)
    out = jax.block_until_ready(out)

    ref = reference(latents_in, weights, biases, avg_style)
    assert out.shape == (BATCH, N_LATENT, D), out.shape
    np.testing.assert_allclose(np.asarray(out), np.asarray(ref), rtol=1e-2, atol=1e-2)

    print("KERNEL_OK")
</pallas_src>

<mosaic_0001>
module attributes {stable_mosaic.version = 11 : i64} {
  func.func @mapping_kernel(%arg0: i32, %arg1: memref<16x128xf32, #tpu.memory_space<vmem>>, %arg2: memref<4x128x128xf32, #tpu.memory_space<vmem>>, %arg3: memref<4x1x128xf32, #tpu.memory_space<vmem>>, %arg4: memref<1x128xf32, #tpu.memory_space<vmem>>, %arg5: memref<16x128xf32, #tpu.memory_space<vmem>>) attributes {dimension_semantics = [#tpu.dimension_semantics<parallel>], iteration_bounds = array<i64: 1>, scalar_prefetch = 0 : i64, scratch_operands = 0 : i64, tpu.core_type = #tpu.core_type<tc>, window_params = [{transform_indices = @transform_0, window_bounds = array<i64: 16, 128>}, {pipeline_mode = #tpu.pipeline_mode<synchronous>, transform_indices = @transform_1, window_bounds = array<i64: 4, 128, 128>}, {pipeline_mode = #tpu.pipeline_mode<synchronous>, transform_indices = @transform_2, window_bounds = array<i64: 4, 1, 128>}, {pipeline_mode = #tpu.pipeline_mode<synchronous>, transform_indices = @transform_3, window_bounds = array<i64: 1, 128>}, {transform_indices = @transform_4, window_bounds = array<i64: 16, 128>}]} {
    %c0 = arith.constant 0 : index
    %c0_0 = arith.constant 0 : index
    %0 = vector.load %arg1[%c0, %c0_0] : memref<16x128xf32, #tpu.memory_space<vmem>>, vector<16x128xf32>
    %1 = arith.mulf %0, %0 : vector<16x128xf32>
    %cst = arith.constant dense<0.000000e+00> : vector<16xf32>
    %2 = vector.multi_reduction <add>, %1, %cst [1] : vector<16x128xf32> to vector<16xf32>
    %3 = vector.shape_cast %2 : vector<16xf32> to vector<16x1xf32>
    %cst_1 = arith.constant 1.280000e+02 : f32
    %4 = vector.broadcast %cst_1 : f32 to vector<16x1xf32>
    %5 = arith.divf %3, %4 : vector<16x1xf32>
    %cst_2 = arith.constant 9.99999993E-9 : f32
    %6 = vector.broadcast %cst_2 : f32 to vector<16x1xf32>
    %7 = arith.addf %5, %6 : vector<16x1xf32>
    %8 = math.rsqrt %7 : vector<16x1xf32>
    %9 = vector.broadcast %8 : vector<16x1xf32> to vector<16x128xf32>
    %10 = arith.mulf %0, %9 : vector<16x128xf32>
    %c0_3 = arith.constant 0 : index
    %c0_4 = arith.constant 0 : index
    %c0_5 = arith.constant 0 : index
    %11 = vector.load %arg2[%c0_3, %c0_4, %c0_5] : memref<4x128x128xf32, #tpu.memory_space<vmem>>, vector<1x128x128xf32>
    %12 = vector.shape_cast %11 : vector<1x128x128xf32> to vector<128x128xf32>
    %cst_6 = arith.constant dense<0.000000e+00> : vector<16x128xf32>
    %13 = tpu.matmul %10, %12, %cst_6 {dimension_numbers = #tpu.dot_dimension_numbers<[1], [0], [0], [1], [0, 0, 1, 1], [], []>} : vector<16x128xf32>, vector<128x128xf32>, vector<16x128xf32> -> vector<16x128xf32>
    %cst_7 = arith.constant 1.250000e-03 : f32
    %14 = vector.broadcast %cst_7 : f32 to vector<16x128xf32>
    %15 = arith.mulf %13, %14 : vector<16x128xf32>
    %c0_8 = arith.constant 0 : index
    %c0_9 = arith.constant 0 : index
    %c0_10 = arith.constant 0 : index
    %16 = vector.load %arg3[%c0_8, %c0_9, %c0_10] : memref<4x1x128xf32, #tpu.memory_space<vmem>>, vector<1x1x128xf32>
    %17 = vector.shape_cast %16 : vector<1x1x128xf32> to vector<1x128xf32>
    %cst_11 = arith.constant 0.0141421352 : f32
    %18 = vector.broadcast %cst_11 : f32 to vector<1x128xf32>
    %19 = arith.mulf %17, %18 : vector<1x128xf32>
    %20 = vector.broadcast %19 : vector<1x128xf32> to vector<16x128xf32>
    %21 = arith.addf %15, %20 : vector<16x128xf32>
    %cst_12 = arith.constant 2.000000e-01 : f32
    %22 = vector.broadcast %cst_12 : f32 to vector<16x128xf32>
    %23 = arith.mulf %22, %21 : vector<16x128xf32>
    %24 = arith.maximumf %21, %23 : vector<16x128xf32>
    %c1 = arith.constant 1 : index
    %c0_13 = arith.constant 0 : index
    %c0_14 = arith.constant 0 : index
    %25 = vector.load %arg2[%c1, %c0_13, %c0_14] : memref<4x128x128xf32, #tpu.memory_space<vmem>>, vector<1x128x128xf32>
    %26 = vector.shape_cast %25 : vector<1x128x128xf32> to vector<128x128xf32>
    %cst_15 = arith.constant dense<0.000000e+00> : vector<16x128xf32>
    %27 = tpu.matmul %24, %26, %cst_15 {dimension_numbers = #tpu.dot_dimension_numbers<[1], [0], [0], [1], [0, 0, 1, 1], [], []>} : vector<16x128xf32>, vector<128x128xf32>, vector<16x128xf32> -> vector<16x128xf32>
    %cst_16 = arith.constant 1.250000e-03 : f32
    %28 = vector.broadcast %cst_16 : f32 to vector<16x128xf32>
    %29 = arith.mulf %27, %28 : vector<16x128xf32>
    %c1_17 = arith.constant 1 : index
    %c0_18 = arith.constant 0 : index
    %c0_19 = arith.constant 0 : index
    %30 = vector.load %arg3[%c1_17, %c0_18, %c0_19] : memref<4x1x128xf32, #tpu.memory_space<vmem>>, vector<1x1x128xf32>
    %31 = vector.shape_cast %30 : vector<1x1x128xf32> to vector<1x128xf32>
    %cst_20 = arith.constant 0.0141421352 : f32
    %32 = vector.broadcast %cst_20 : f32 to vector<1x128xf32>
    %33 = arith.mulf %31, %32 : vector<1x128xf32>
    %34 = vector.broadcast %33 : vector<1x128xf32> to vector<16x128xf32>
    %35 = arith.addf %29, %34 : vector<16x128xf32>
    %cst_21 = arith.constant 2.000000e-01 : f32
    %36 = vector.broadcast %cst_21 : f32 to vector<16x128xf32>
    %37 = arith.mulf %36, %35 : vector<16x128xf32>
    %38 = arith.maximumf %35, %37 : vector<16x128xf32>
    %c2 = arith.constant 2 : index
    %c0_22 = arith.constant 0 : index
    %c0_23 = arith.constant 0 : index
    %39 = vector.load %arg2[%c2, %c0_22, %c0_23] : memref<4x128x128xf32, #tpu.memory_space<vmem>>, vector<1x128x128xf32>
    %40 = vector.shape_cast %39 : vector<1x128x128xf32> to vector<128x128xf32>
    %cst_24 = arith.constant dense<0.000000e+00> : vector<16x128xf32>
    %41 = tpu.matmul %38, %40, %cst_24 {dimension_numbers = #tpu.dot_dimension_numbers<[1], [0], [0], [1], [0, 0, 1, 1], [], []>} : vector<16x128xf32>, vector<128x128xf32>, vector<16x128xf32> -> vector<16x128xf32>
    %cst_25 = arith.constant 1.250000e-03 : f32
    %42 = vector.broadcast %cst_25 : f32 to vector<16x128xf32>
    %43 = arith.mulf %41, %42 : vector<16x128xf32>
    %c2_26 = arith.constant 2 : index
    %c0_27 = arith.constant 0 : index
    %c0_28 = arith.constant 0 : index
    %44 = vector.load %arg3[%c2_26, %c0_27, %c0_28] : memref<4x1x128xf32, #tpu.memory_space<vmem>>, vector<1x1x128xf32>
    %45 = vector.shape_cast %44 : vector<1x1x128xf32> to vector<1x128xf32>
    %cst_29 = arith.constant 0.0141421352 : f32
    %46 = vector.broadcast %cst_29 : f32 to vector<1x128xf32>
    %47 = arith.mulf %45, %46 : vector<1x128xf32>
    %48 = vector.broadcast %47 : vector<1x128xf32> to vector<16x128xf32>
    %49 = arith.addf %43, %48 : vector<16x128xf32>
    %cst_30 = arith.constant 2.000000e-01 : f32
    %50 = vector.broadcast %cst_30 : f32 to vector<16x128xf32>
    %51 = arith.mulf %50, %49 : vector<16x128xf32>
    %52 = arith.maximumf %49, %51 : vector<16x128xf32>
    %c3 = arith.constant 3 : index
    %c0_31 = arith.constant 0 : index
    %c0_32 = arith.constant 0 : index
    %53 = vector.load %arg2[%c3, %c0_31, %c0_32] : memref<4x128x128xf32, #tpu.memory_space<vmem>>, vector<1x128x128xf32>
    %54 = vector.shape_cast %53 : vector<1x128x128xf32> to vector<128x128xf32>
    %cst_33 = arith.constant dense<0.000000e+00> : vector<16x128xf32>
    %55 = tpu.matmul %52, %54, %cst_33 {dimension_numbers = #tpu.dot_dimension_numbers<[1], [0], [0], [1], [0, 0, 1, 1], [], []>} : vector<16x128xf32>, vector<128x128xf32>, vector<16x128xf32> -> vector<16x128xf32>
    %cst_34 = arith.constant 1.250000e-03 : f32
    %56 = vector.broadcast %cst_34 : f32 to vector<16x128xf32>
    %57 = arith.mulf %55, %56 : vector<16x128xf32>
    %c3_35 = arith.constant 3 : index
    %c0_36 = arith.constant 0 : index
    %c0_37 = arith.constant 0 : index
    %58 = vector.load %arg3[%c3_35, %c0_36, %c0_37] : memref<4x1x128xf32, #tpu.memory_space<vmem>>, vector<1x1x128xf32>
    %59 = vector.shape_cast %58 : vector<1x1x128xf32> to vector<1x128xf32>
    %cst_38 = arith.constant 0.0141421352 : f32
    %60 = vector.broadcast %cst_38 : f32 to vector<1x128xf32>
    %61 = arith.mulf %59, %60 : vector<1x128xf32>
    %62 = vector.broadcast %61 : vector<1x128xf32> to vector<16x128xf32>
    %63 = arith.addf %57, %62 : vector<16x128xf32>
    %cst_39 = arith.constant 2.000000e-01 : f32
    %64 = vector.broadcast %cst_39 : f32 to vector<16x128xf32>
    %65 = arith.mulf %64, %63 : vector<16x128xf32>
    %66 = arith.maximumf %63, %65 : vector<16x128xf32>
    %c0_40 = arith.constant 0 : index
    %c0_41 = arith.constant 0 : index
    %67 = vector.load %arg5[%c0_40, %c0_41] : memref<16x128xf32, #tpu.memory_space<vmem>>, vector<16x128xf32>
    tpu.vector_store %arg5[%c0_40, %c0_41], %66 {strides = array<i32>} : memref<16x128xf32, #tpu.memory_space<vmem>>, vector<16x128xf32>,
    return
  }
  func.func @transform_0(%arg0: i32) -> (i32, i32) {
    %c0_i32 = arith.constant 0 : i32
    %c0_i32_0 = arith.constant 0 : i32
    return %arg0, %c0_i32 : i32, i32
  }
  func.func @transform_1(%arg0: i32) -> (i32, i32, i32) {
    %c0_i32 = arith.constant 0 : i32
    %c0_i32_0 = arith.constant 0 : i32
    %c0_i32_1 = arith.constant 0 : i32
    %c0_i32_2 = arith.constant 0 : i32
    return %c0_i32, %c0_i32_0, %c0_i32_1 : i32, i32, i32
  }
  func.func @transform_2(%arg0: i32) -> (i32, i32, i32) {
    %c0_i32 = arith.constant 0 : i32
    %c0_i32_0 = arith.constant 0 : i32
    %c0_i32_1 = arith.constant 0 : i32
    %c0_i32_2 = arith.constant 0 : i32
    return %c0_i32, %c0_i32_0, %c0_i32_1 : i32, i32, i32
  }
  func.func @transform_3(%arg0: i32) -> (i32, i32) {
    %c0_i32 = arith.constant 0 : i32
    %c0_i32_0 = arith.constant 0 : i32
    %c0_i32_1 = arith.constant 0 : i32
    return %c0_i32, %c0_i32_0 : i32, i32
  }
  func.func @transform_4(%arg0: i32) -> (i32, i32) {
    %c0_i32 = arith.constant 0 : i32
    %c0_i32_0 = arith.constant 0 : i32
    return %arg0, %c0_i32 : i32, i32
  }
}

</mosaic_0001>

<llo_original>
// kernel: tpu_custom_call.1
$region0: #{tpu_custom_call.1}
  #allocation0 [shape = 'u32[]', space=smem, size = 0x4, offset = 0x4, fixed_abs, tag = 'smem constant byte address 0x4 - core index']
  #allocation1 [shape = 'u32[144,128]{1,0:T(1,128)}', space=vmem, size = 0x12000, scoped, tag = 'internal scratch']
  %s0 = inlined_call_operand.hbm [shape: f32[16,128], index: 0, kind: input, shape index: {}]
  %s1 = inlined_call_operand.hbm [shape: f32[4,128,128], index: 1, kind: input, shape index: {}]
  %s2 = inlined_call_operand.vmem [shape: f32[4,1,128], index: 2, kind: input, shape index: {}]
  %s3 = inlined_call_operand.vmem [shape: f32[1,128], index: 3, kind: input, shape index: {}]
  %s4 = inlined_call_operand.hbm [shape: f32[16,128], index: 4, kind: output, shape index: {}]
  %s5 = sld [smem:[#allocation0]]
  $region34: #{tpu_custom_call.1} parent=0
    _
  %s7 = ssub.s32 1, %s5
  %s8 = scalar_select 0, %s7, %s5
  $region1: #{tpu_custom_call.1} parent=0
    #allocation2 [shape = 'u8[8192]{0}', space=vmem, size = 0x2000, scoped, tag = 'input window, operand 0, single buffered']
    #allocation3 [shape = 's32[1]{0}', space=sflag, size = 0x4, scoped, tag = 'scoped memory for tpu_custom_call.1']
    #allocation4 [shape = 's32[1]{0}', space=sflag, size = 0x4, scoped, tag = 'scoped memory for tpu_custom_call.1']
    #allocation5 [shape = 'u8[262144]{0}', space=vmem, size = 0x40000, scoped, tag = 'input window, operand 1, single buffered']
    #allocation6 [shape = 's32[1]{0}', space=sflag, size = 0x4, scoped, tag = 'scoped memory for tpu_custom_call.1']
    #allocation7 [shape = 'u8[8192]{0}', space=vmem, size = 0x2000, scoped, tag = 'output window, operand 0, single buffered']
    %9 = vsyncpa [#allocation3], 0
    %10 = vsyncpa [#allocation6], 0
    %11 = vsyncpa [#allocation4], 0
    // Predicated region
    $region2: #{tpu_custom_call.1} parent=1 // pred_check
      _
    $region3: #{tpu_custom_call.1} parent=1 // pred_check_branch
      %13 = sbr.rel (0) target = $region5
    $region4: #{tpu_custom_call.1} parent=1 // pred_region
      %s15 = ssub.s32 256, 256
      %16 = vsyncadd [#allocation3], %s15
      %s17 = sshll.u32 [#allocation2], 4
      %s18 = int_to_ptr.vmem [resolvable:$true] %s17
      %23 = dma.hbm_to_vmem [thread:$0]  %s0, 256, %s18, [#allocation3], 128, 128, 8
    $region5: #{tpu_custom_call.1} parent=1 // pred_fallthru
      _
    // Predicated region
    $region6: #{tpu_custom_call.1} parent=1 // pred_check
      _
    $region7: #{tpu_custom_call.1} parent=1 // pred_check_branch
      %25 = sbr.rel (0) target = $region9
    $region8: #{tpu_custom_call.1} parent=1 // pred_region
      %s27 = ssub.s32 8192, 8192
      %28 = vsyncadd [#allocation6], %s27
      %s29 = sshll.u32 [#allocation5], 4
      %s30 = int_to_ptr.vmem [resolvable:$true] %s29
      %35 = dma.hbm_to_vmem [thread:$0]  %s1, 8192, %s30, [#allocation6], 128, 128, 8
    $region9: #{tpu_custom_call.1} parent=1 // pred_fallthru
      _
    // Predicated region
    $region10: #{tpu_custom_call.1} parent=1 // pred_check
      _
    $region11: #{tpu_custom_call.1} parent=1 // pred_check_branch
      %37 = sbr.rel (0) target = $region13
    $region12: #{tpu_custom_call.1} parent=1 // pred_region
      _
    $region13: #{tpu_custom_call.1} parent=1 // pred_fallthru
      _
    // Predicated region
    $region14: #{tpu_custom_call.1} parent=1 // pred_check
      _
    $region15: #{tpu_custom_call.1} parent=1 // pred_check_branch
      %39 = sbr.rel (0) target = $region17
    $region16: #{tpu_custom_call.1} parent=1 // pred_region
      _
    $region17: #{tpu_custom_call.1} parent=1 // pred_fallthru
      _
    // Predicated region
    $region18: #{tpu_custom_call.1} parent=1 // pred_check
      _
    $region19: #{tpu_custom_call.1} parent=1 // pred_check_branch
      %41 = sbr.rel (0) target = $region21
    $region20: #{tpu_custom_call.1} parent=1 // pred_region
      %42 = dma.done [#allocation3], 256
    $region21: #{tpu_custom_call.1} parent=1 // pred_fallthru
      _
    // Predicated region
    $region22: #{tpu_custom_call.1} parent=1 // pred_check
      _
    $region23: #{tpu_custom_call.1} parent=1 // pred_check_branch
      %44 = sbr.rel (0) target = $region25
    $region24: #{tpu_custom_call.1} parent=1 // pred_region
      %45 = dma.done [#allocation6], 8192
    $region25: #{tpu_custom_call.1} parent=1 // pred_fallthru
      _
    %v46 = vld [vmem:[#allocation2] sm:$0xff]
    %v47 = vld [vmem:[#allocation2 + $0x8] sm:$0xff]
    %v48 = vmul.f32 %v46, %v46
    %v49 = vmul.f32 %v47, %v47
    %50 = vadd.xlane.f32.xlu0 %v48
    %v51 = vpop.xlane.xlu0 %50
    %52 = vadd.xlane.f32.xlu0 %v49
    %v53 = vpop.xlane.xlu0 %52
    %v54 = vrcp.pop 128.0
    %v55 = vmul.f32 %v51, %v54
    %v56 = vmul.f32 %v53, %v54
    %v57 = vadd.f32 %v55, 1e-08
    %v58 = vadd.f32 %v56, 1e-08
    %v59 = vrsqrt.pop %v57
    %v60 = vrsqrt.pop %v58
    %v61 = vmul.f32 %v46, %v59
    %v62 = vmul.f32 %v47, %v60
    %v63 = vld [vmem:[#allocation5] sm:$0xff]
    %v64 = vld [vmem:[#allocation5 + $0x8] sm:$0xff]
    %v65 = vld [vmem:[#allocation5 + $0x10] sm:$0xff]
    %v66 = vld [vmem:[#allocation5 + $0x18] sm:$0xff]
    %v67 = vld [vmem:[#allocation5 + $0x20] sm:$0xff]
    %v68 = vld [vmem:[#allocation5 + $0x28] sm:$0xff]
    %v69 = vld [vmem:[#allocation5 + $0x30] sm:$0xff]
    %v70 = vld [vmem:[#allocation5 + $0x38] sm:$0xff]
    %v71 = vld [vmem:[#allocation5 + $0x40] sm:$0xff]
    %v72 = vld [vmem:[#allocation5 + $0x48] sm:$0xff]
    %v73 = vld [vmem:[#allocation5 + $0x50] sm:$0xff]
    %v74 = vld [vmem:[#allocation5 + $0x58] sm:$0xff]
    %v75 = vld [vmem:[#allocation5 + $0x60] sm:$0xff]
    %v76 = vld [vmem:[#allocation5 + $0x68] sm:$0xff]
    %v77 = vld [vmem:[#allocation5 + $0x70] sm:$0xff]
    %v78 = vld [vmem:[#allocation5 + $0x78] sm:$0xff]
    %79 = vmatprep.subr.mxu0 0.0
    %80 = vmatpush1.msra.mxu0 %v63
    %81 = vmatprep.subr.mxu0 0.0
    %82 = vmatpush1.msra.mxu0 %v64
    %83 = vmatprep.subr.mxu0 0.0
    %84 = vmatpush1.msra.mxu0 %v65
    %85 = vmatprep.subr.mxu0 0.0
    %86 = vmatpush1.msra.mxu0 %v66
    %87 = vmatprep.subr.mxu0 0.0
    %88 = vmatpush1.msra.mxu0 %v67
    %89 = vmatprep.subr.mxu0 0.0
    %90 = vmatpush1.msra.mxu0 %v68
    %91 = vmatprep.subr.mxu0 0.0
    %92 = vmatpush1.msra.mxu0 %v69
    %93 = vmatprep.subr.mxu0 0.0
    %94 = vmatpush1.msra.mxu0 %v70
    %95 = vmatprep.subr.mxu0 0.0
    %96 = vmatpush1.msra.mxu0 %v71
    %97 = vmatprep.subr.mxu0 0.0
    %98 = vmatpush1.msra.mxu0 %v72
    %99 = vmatprep.subr.mxu0 0.0
    %100 = vmatpush1.msra.mxu0 %v73
    %101 = vmatprep.subr.mxu0 0.0
    %102 = vmatpush1.msra.mxu0 %v74
    %103 = vmatprep.subr.mxu0 0.0
    %104 = vmatpush1.msra.mxu0 %v75
    %105 = vmatprep.subr.mxu0 0.0
    %106 = vmatpush1.msra.mxu0 %v76
    %107 = vmatprep.subr.mxu0 0.0
    %108 = vmatpush1.msra.mxu0 %v77
    %109 = vmatprep.subr.mxu0 0.0
    %110 = vmatpush1.msra.mxu0 %v78
    %111 = vmatprep.subr.mxu0 0.0
    %112 = vmatpush1.msra.mxu0 0.0
    %113 = vmatprep.subr.mxu0 0.0
    %114 = vmatpush1.msra.mxu0 0.0
    %115 = vmatprep.subr.mxu0 0.0
    %116 = vmatpush1.msra.mxu0 0.0
    %117 = vmatprep.subr.mxu0 0.0
    %118 = vmatpush1.msra.mxu0 0.0
    %119 = vmatprep.subr.mxu0 0.0
    %120 = vmatpush1.msra.mxu0 0.0
    %121 = vmatprep.subr.mxu0 0.0
    %122 = vmatpush1.msra.mxu0 0.0
    %123 = vmatprep.subr.mxu0 0.0
    %124 = vmatpush1.msra.mxu0 0.0
    %125 = vmatprep.subr.mxu0 0.0
    %126 = vmatpush1.msra.mxu0 0.0
    %127 = vmatprep.subr.mxu0 0.0
    %128 = vmatpush1.msra.mxu0 0.0
    %129 = vmatprep.subr.mxu0 0.0
    %130 = vmatpush1.msra.mxu0 0.0
    %131 = vmatprep.subr.mxu0 0.0
    %132 = vmatpush1.msra.mxu0 0.0
    %133 = vmatprep.subr.mxu0 0.0
    %134 = vmatpush1.msra.mxu0 0.0
    %135 = vmatprep.subr.mxu0 0.0
    %136 = vmatpush1.msra.mxu0 0.0
    %137 = vmatprep.subr.mxu0 0.0
    %138 = vmatpush1.msra.mxu0 0.0
    %139 = vmatprep.subr.mxu0 0.0
    %140 = vmatpush1.msra.mxu0 0.0
    %141 = vmatprep.subr.mxu0 0.0
    %142 = vmatpush1.msra.mxu0 0.0
    %143 = vmatprep.mubr.f32.mxu0 0.0
    %144 = vmatmul.mubr.f32.gmra.mrb[0].mxu0 %v61
    %v145 = vpop.f32.mrb[0].mxu0
    %v146 = vadd.f32 0.0, %v145
    %v147 = vpop.f32.mrb[0].mxu0
    %148 = vmatprep.mubr.f32.mxu0 0.0
    %149 = vmatmul.mubr.f32.gmra.mrb[0].mxu0 %v62
    %v150 = vpop.f32.mrb[0].mxu0
    %v151 = vadd.f32 0.0, %v150
    %v152 = vpop.f32.mrb[0].mxu0
    %153 = vdwg.mxu0
    %v154 = vmul.f32 %v146, 0.00125
    %v155 = vmul.f32 %v151, 0.00125
    %v156 = vld [vmem:[%s2] sm:$0x1]
    %v157 = vmul.f32 %v156, 0.014142135
    %v159 = vlaneseq
    %v160 = vshrl.u32 %v159, 7
    %v161 = vsub.s32 0, %v160
    %v162 = vrot.slane %v157, %v161
    %v164 = vadd.f32 %v154, %v162
    %v165 = vadd.f32 %v155, %v162
    %v166 = vmul.f32 %v164, 0.2
    %v167 = vmul.f32 %v165, 0.2
    %v168 = vmax.f32 %v164, %v166
    %v169 = vmax.f32 %v165, %v167
    %s170 = scalar_lea.vmem [#allocation5], 128
    %v171 = vld [vmem:[%s170] sm:$0xff]
    %v172 = vld [vmem:[%s170 + $0x8] sm:$0xff]
    %v173 = vld [vmem:[%s170 + $0x10] sm:$0xff]
    %v174 = vld [vmem:[%s170 + $0x18] sm:$0xff]
    %v175 = vld [vmem:[%s170 + $0x20] sm:$0xff]
    %v176 = vld [vmem:[%s170 + $0x28] sm:$0xff]
    %v177 = vld [vmem:[%s170 + $0x30] sm:$0xff]
    %v178 = vld [vmem:[%s170 + $0x38] sm:$0xff]
    %v179 = vld [vmem:[%s170 + $0x40] sm:$0xff]
    %v180 = vld [vmem:[%s170 + $0x48] sm:$0xff]
    %v181 = vld [vmem:[%s170 + $0x50] sm:$0xff]
    %v182 = vld [vmem:[%s170 + $0x58] sm:$0xff]
    %v183 = vld [vmem:[%s170 + $0x60] sm:$0xff]
    %v184 = vld [vmem:[%s170 + $0x68] sm:$0xff]
    %v185 = vld [vmem:[%s170 + $0x70] sm:$0xff]
    %v186 = vld [vmem:[%s170 + $0x78] sm:$0xff]
    %187 = vmatprep.subr.mxu0 0.0
    %188 = vmatpush1.msra.mxu0 %v171
    %189 = vmatprep.subr.mxu0 0.0
    %190 = vmatpush1.msra.mxu0 %v172
    %191 = vmatprep.subr.mxu0 0.0
    %192 = vmatpush1.msra.mxu0 %v173
    %193 = vmatprep.subr.mxu0 0.0
    %194 = vmatpush1.msra.mxu0 %v174
    %195 = vmatprep.subr.mxu0 0.0
    %196 = vmatpush1.msra.mxu0 %v175
    %197 = vmatprep.subr.mxu0 0.0
    %198 = vmatpush1.msra.mxu0 %v176
    %199 = vmatprep.subr.mxu0 0.0
    %200 = vmatpush1.msra.mxu0 %v177
    %201 = vmatprep.subr.mxu0 0.0
    %202 = vmatpush1.msra.mxu0 %v178
    %203 = vmatprep.subr.mxu0 0.0
    %204 = vmatpush1.msra.mxu0 %v179
    %205 = vmatprep.subr.mxu0 0.0
    %206 = vmatpush1.msra.mxu0 %v180
    %207 = vmatprep.subr.mxu0 0.0
    %208 = vmatpush1.msra.mxu0 %v181
    %209 = vmatprep.subr.mxu0 0.0
    %210 = vmatpush1.msra.mxu0 %v182
    %211 = vmatprep.subr.mxu0 0.0
    %212 = vmatpush1.msra.mxu0 %v183
    %213 = vmatprep.subr.mxu0 0.0
    %214 = vmatpush1.msra.mxu0 %v184
    %215 = vmatprep.subr.mxu0 0.0
    %216 = vmatpush1.msra.mxu0 %v185
    %217 = vmatprep.subr.mxu0 0.0
    %218 = vmatpush1.msra.mxu0 %v186
    %219 = vmatprep.subr.mxu0 0.0
    %220 = vmatpush1.msra.mxu0 0.0
    %221 = vmatprep.subr.mxu0 0.0
    %222 = vmatpush1.msra.mxu0 0.0
    %223 = vmatprep.subr.mxu0 0.0
    %224 = vmatpush1.msra.mxu0 0.0
    %225 = vmatprep.subr.mxu0 0.0
    %226 = vmatpush1.msra.mxu0 0.0
    %227 = vmatprep.subr.mxu0 0.0
    %228 = vmatpush1.msra.mxu0 0.0
    %229 = vmatprep.subr.mxu0 0.0
    %230 = vmatpush1.msra.mxu0 0.0
    %231 = vmatprep.subr.mxu0 0.0
    %232 = vmatpush1.msra.mxu0 0.0
    %233 = vmatprep.subr.mxu0 0.0
    %234 = vmatpush1.msra.mxu0 0.0
    %235 = vmatprep.subr.mxu0 0.0
    %236 = vmatpush1.msra.mxu0 0.0
    %237 = vmatprep.subr.mxu0 0.0
    %238 = vmatpush1.msra.mxu0 0.0
    %239 = vmatprep.subr.mxu0 0.0
    %240 = vmatpush1.msra.mxu0 0.0
    %241 = vmatprep.subr.mxu0 0.0
    %242 = vmatpush1.msra.mxu0 0.0
    %243 = vmatprep.subr.mxu0 0.0
    %244 = vmatpush1.msra.mxu0 0.0
    %245 = vmatprep.subr.mxu0 0.0
    %246 = vmatpush1.msra.mxu0 0.0
    %247 = vmatprep.subr.mxu0 0.0
    %248 = vmatpush1.msra.mxu0 0.0
    %249 = vmatprep.subr.mxu0 0.0
    %250 = vmatpush1.msra.mxu0 0.0
    %251 = vmatprep.mubr.f32.mxu0 0.0
    %252 = vmatmul.mubr.f32.gmra.mrb[0].mxu0 %v168
    %v253 = vpop.f32.mrb[0].mxu0
    %v254 = vadd.f32 0.0, %v253
    %v255 = vpop.f32.mrb[0].mxu0
    %256 = vmatprep.mubr.f32.mxu0 0.0
    %257 = vmatmul.mubr.f32.gmra.mrb[0].mxu0 %v169
    %v258 = vpop.f32.mrb[0].mxu0
    %v259 = vadd.f32 0.0, %v258
    %v260 = vpop.f32.mrb[0].mxu0
    %261 = vdwg.mxu0
    %v262 = vmul.f32 %v254, 0.00125
    %v263 = vmul.f32 %v259, 0.00125
    %s264 = scalar_lea.vmem %s2, 1
    %v265 = vld [vmem:[%s264] sm:$0x1]
    %v266 = vmul.f32 %v265, 0.014142135
    %v268 = vlaneseq
    %v269 = vshrl.u32 %v268, 7
    %v270 = vsub.s32 0, %v269
    %v271 = vrot.slane %v266, %v270
    %v273 = vadd.f32 %v262, %v271
    %v274 = vadd.f32 %v263, %v271
    %v275 = vmul.f32 %v273, 0.2
    %v276 = vmul.f32 %v274, 0.2
    %v277 = vmax.f32 %v273, %v275
    %v278 = vmax.f32 %v274, %v276
    %s279 = scalar_lea.vmem [#allocation5], 256
    %v280 = vld [vmem:[%s279] sm:$0xff]
    %v281 = vld [vmem:[%s279 + $0x8] sm:$0xff]
    %v282 = vld [vmem:[%s279 + $0x10] sm:$0xff]
    %v283 = vld [vmem:[%s279 + $0x18] sm:$0xff]
    %v284 = vld [vmem:[%s279 + $0x20] sm:$0xff]
    %v285 = vld [vmem:[%s279 + $0x28] sm:$0xff]
    %v286 = vld [vmem:[%s279 + $0x30] sm:$0xff]
    %v287 = vld [vmem:[%s279 + $0x38] sm:$0xff]
    %v288 = vld [vmem:[%s279 + $0x40] sm:$0xff]
    %v289 = vld [vmem:[%s279 + $0x48] sm:$0xff]
    %v290 = vld [vmem:[%s279 + $0x50] sm:$0xff]
    %v291 = vld [vmem:[%s279 + $0x58] sm:$0xff]
    %v292 = vld [vmem:[%s279 + $0x60] sm:$0xff]
    %v293 = vld [vmem:[%s279 + $0x68] sm:$0xff]
    %v294 = vld [vmem:[%s279 + $0x70] sm:$0xff]
    %v295 = vld [vmem:[%s279 + $0x78] sm:$0xff]
    %296 = vmatprep.subr.mxu0 0.0
    %297 = vmatpush1.msra.mxu0 %v280
    %298 = vmatprep.subr.mxu0 0.0
    %299 = vmatpush1.msra.mxu0 %v281
    %300 = vmatprep.subr.mxu0 0.0
    %301 = vmatpush1.msra.mxu0 %v282
    %302 = vmatprep.subr.mxu0 0.0
    %303 = vmatpush1.msra.mxu0 %v283
    %304 = vmatprep.subr.mxu0 0.0
    %305 = vmatpush1.msra.mxu0 %v284
    %306 = vmatprep.subr.mxu0 0.0
    %307 = vmatpush1.msra.mxu0 %v285
    %308 = vmatprep.subr.mxu0 0.0
    %309 = vmatpush1.msra.mxu0 %v286
    %310 = vmatprep.subr.mxu0 0.0
    %311 = vmatpush1.msra.mxu0 %v287
    %312 = vmatprep.subr.mxu0 0.0
    %313 = vmatpush1.msra.mxu0 %v288
    %314 = vmatprep.subr.mxu0 0.0
    %315 = vmatpush1.msra.mxu0 %v289
    %316 = vmatprep.subr.mxu0 0.0
    %317 = vmatpush1.msra.mxu0 %v290
    %318 = vmatprep.subr.mxu0 0.0
    %319 = vmatpush1.msra.mxu0 %v291
    %320 = vmatprep.subr.mxu0 0.0
    %321 = vmatpush1.msra.mxu0 %v292
    %322 = vmatprep.subr.mxu0 0.0
    %323 = vmatpush1.msra.mxu0 %v293
    %324 = vmatprep.subr.mxu0 0.0
    %325 = vmatpush1.msra.mxu0 %v294
    %326 = vmatprep.subr.mxu0 0.0
    %327 = vmatpush1.msra.mxu0 %v295
    %328 = vmatprep.subr.mxu0 0.0
    %329 = vmatpush1.msra.mxu0 0.0
    %330 = vmatprep.subr.mxu0 0.0
    %331 = vmatpush1.msra.mxu0 0.0
    %332 = vmatprep.subr.mxu0 0.0
    %333 = vmatpush1.msra.mxu0 0.0
    %334 = vmatprep.subr.mxu0 0.0
    %335 = vmatpush1.msra.mxu0 0.0
    %336 = vmatprep.subr.mxu0 0.0
    %337 = vmatpush1.msra.mxu0 0.0
    %338 = vmatprep.subr.mxu0 0.0
    %339 = vmatpush1.msra.mxu0 0.0
    %340 = vmatprep.subr.mxu0 0.0
    %341 = vmatpush1.msra.mxu0 0.0
    %342 = vmatprep.subr.mxu0 0.0
    %343 = vmatpush1.msra.mxu0 0.0
    %344 = vmatprep.subr.mxu0 0.0
    %345 = vmatpush1.msra.mxu0 0.0
    %346 = vmatprep.subr.mxu0 0.0
    %347 = vmatpush1.msra.mxu0 0.0
    %348 = vmatprep.subr.mxu0 0.0
    %349 = vmatpush1.msra.mxu0 0.0
    %350 = vmatprep.subr.mxu0 0.0
    %351 = vmatpush1.msra.mxu0 0.0
    %352 = vmatprep.subr.mxu0 0.0
    %353 = vmatpush1.msra.mxu0 0.0
    %354 = vmatprep.subr.mxu0 0.0
    %355 = vmatpush1.msra.mxu0 0.0
    %356 = vmatprep.subr.mxu0 0.0
    %357 = vmatpush1.msra.mxu0 0.0
    %358 = vmatprep.subr.mxu0 0.0
    %359 = vmatpush1.msra.mxu0 0.0
    %360 = vmatprep.mubr.f32.mxu0 0.0
    %361 = vmatmul.mubr.f32.gmra.mrb[0].mxu0 %v277
    %v362 = vpop.f32.mrb[0].mxu0
    %v363 = vadd.f32 0.0, %v362
    %v364 = vpop.f32.mrb[0].mxu0
    %365 = vmatprep.mubr.f32.mxu0 0.0
    %366 = vmatmul.mubr.f32.gmra.mrb[0].mxu0 %v278
    %v367 = vpop.f32.mrb[0].mxu0
    %v368 = vadd.f32 0.0, %v367
    %v369 = vpop.f32.mrb[0].mxu0
    %370 = vdwg.mxu0
    %v371 = vmul.f32 %v363, 0.00125
    %v372 = vmul.f32 %v368, 0.00125
    %s373 = scalar_lea.vmem %s2, 2
    %v374 = vld [vmem:[%s373] sm:$0x1]
    %v375 = vmul.f32 %v374, 0.014142135
    %v377 = vlaneseq
    %v378 = vshrl.u32 %v377, 7
    %v379 = vsub.s32 0, %v378
    %v380 = vrot.slane %v375, %v379
    %v382 = vadd.f32 %v371, %v380
    %v383 = vadd.f32 %v372, %v380
    %v384 = vmul.f32 %v382, 0.2
    %v385 = vmul.f32 %v383, 0.2
    %v386 = vmax.f32 %v382, %v384
    %v387 = vmax.f32 %v383, %v385
    %s388 = scalar_lea.vmem [#allocation5], 384
    %v389 = vld [vmem:[%s388] sm:$0xff]
    %v390 = vld [vmem:[%s388 + $0x8] sm:$0xff]
    %v391 = vld [vmem:[%s388 + $0x10] sm:$0xff]
    %v392 = vld [vmem:[%s388 + $0x18] sm:$0xff]
    %v393 = vld [vmem:[%s388 + $0x20] sm:$0xff]
    %v394 = vld [vmem:[%s388 + $0x28] sm:$0xff]
    %v395 = vld [vmem:[%s388 + $0x30] sm:$0xff]
    %v396 = vld [vmem:[%s388 + $0x38] sm:$0xff]
    %v397 = vld [vmem:[%s388 + $0x40] sm:$0xff]
    %v398 = vld [vmem:[%s388 + $0x48] sm:$0xff]
    %v399 = vld [vmem:[%s388 + $0x50] sm:$0xff]
    %v400 = vld [vmem:[%s388 + $0x58] sm:$0xff]
    %v401 = vld [vmem:[%s388 + $0x60] sm:$0xff]
    %v402 = vld [vmem:[%s388 + $0x68] sm:$0xff]
    %v403 = vld [vmem:[%s388 + $0x70] sm:$0xff]
    %v404 = vld [vmem:[%s388 + $0x78] sm:$0xff]
    %405 = vmatprep.subr.mxu0 0.0
    %406 = vmatpush1.msra.mxu0 %v389
    %407 = vmatprep.subr.mxu0 0.0
    %408 = vmatpush1.msra.mxu0 %v390
    %409 = vmatprep.subr.mxu0 0.0
    %410 = vmatpush1.msra.mxu0 %v391
    %411 = vmatprep.subr.mxu0 0.0
    %412 = vmatpush1.msra.mxu0 %v392
    %413 = vmatprep.subr.mxu0 0.0
    %414 = vmatpush1.msra.mxu0 %v393
    %415 = vmatprep.subr.mxu0 0.0
    %416 = vmatpush1.msra.mxu0 %v394
    %417 = vmatprep.subr.mxu0 0.0
    %418 = vmatpush1.msra.mxu0 %v395
    %419 = vmatprep.subr.mxu0 0.0
    %420 = vmatpush1.msra.mxu0 %v396
    %421 = vmatprep.subr.mxu0 0.0
    %422 = vmatpush1.msra.mxu0 %v397
    %423 = vmatprep.subr.mxu0 0.0
    %424 = vmatpush1.msra.mxu0 %v398
    %425 = vmatprep.subr.mxu0 0.0
    %426 = vmatpush1.msra.mxu0 %v399
    %427 = vmatprep.subr.mxu0 0.0
    %428 = vmatpush1.msra.mxu0 %v400
    %429 = vmatprep.subr.mxu0 0.0
    %430 = vmatpush1.msra.mxu0 %v401
    %431 = vmatprep.subr.mxu0 0.0
    %432 = vmatpush1.msra.mxu0 %v402
    %433 = vmatprep.subr.mxu0 0.0
    %434 = vmatpush1.msra.mxu0 %v403
    %435 = vmatprep.subr.mxu0 0.0
    %436 = vmatpush1.msra.mxu0 %v404
    %437 = vmatprep.subr.mxu0 0.0
    %438 = vmatpush1.msra.mxu0 0.0
    %439 = vmatprep.subr.mxu0 0.0
    %440 = vmatpush1.msra.mxu0 0.0
    %441 = vmatprep.subr.mxu0 0.0
    %442 = vmatpush1.msra.mxu0 0.0
    %443 = vmatprep.subr.mxu0 0.0
    %444 = vmatpush1.msra.mxu0 0.0
    %445 = vmatprep.subr.mxu0 0.0
    %446 = vmatpush1.msra.mxu0 0.0
    %447 = vmatprep.subr.mxu0 0.0
    %448 = vmatpush1.msra.mxu0 0.0
    %449 = vmatprep.subr.mxu0 0.0
    %450 = vmatpush1.msra.mxu0 0.0
    %451 = vmatprep.subr.mxu0 0.0
    %452 = vmatpush1.msra.mxu0 0.0
    %453 = vmatprep.subr.mxu0 0.0
    %454 = vmatpush1.msra.mxu0 0.0
    %455 = vmatprep.subr.mxu0 0.0
    %456 = vmatpush1.msra.mxu0 0.0
    %457 = vmatprep.subr.mxu0 0.0
    %458 = vmatpush1.msra.mxu0 0.0
    %459 = vmatprep.subr.mxu0 0.0
    %460 = vmatpush1.msra.mxu0 0.0
    %461 = vmatprep.subr.mxu0 0.0
    %462 = vmatpush1.msra.mxu0 0.0
    %463 = vmatprep.subr.mxu0 0.0
    %464 = vmatpush1.msra.mxu0 0.0
    %465 = vmatprep.subr.mxu0 0.0
    %466 = vmatpush1.msra.mxu0 0.0
    %467 = vmatprep.subr.mxu0 0.0
    %468 = vmatpush1.msra.mxu0 0.0
    %469 = vmatprep.mubr.f32.mxu0 0.0
    %470 = vmatmul.mubr.f32.gmra.mrb[0].mxu0 %v386
    %v471 = vpop.f32.mrb[0].mxu0
    %v472 = vadd.f32 0.0, %v471
    %v473 = vpop.f32.mrb[0].mxu0
    %474 = vmatprep.mubr.f32.mxu0 0.0
    %475 = vmatmul.mubr.f32.gmra.mrb[0].mxu0 %v387
    %v476 = vpop.f32.mrb[0].mxu0
    %v477 = vadd.f32 0.0, %v476
    %v478 = vpop.f32.mrb[0].mxu0
    %479 = vdwg.mxu0
    %v480 = vmul.f32 %v472, 0.00125
    %v481 = vmul.f32 %v477, 0.00125
    %s482 = scalar_lea.vmem %s2, 3
    %v483 = vld [vmem:[%s482] sm:$0x1]
    %v484 = vmul.f32 %v483, 0.014142135
    %v486 = vlaneseq
    %v487 = vshrl.u32 %v486, 7
    %v488 = vsub.s32 0, %v487
    %v489 = vrot.slane %v484, %v488
    %v491 = vadd.f32 %v480, %v489
    %v492 = vadd.f32 %v481, %v489
    %v493 = vmul.f32 %v491, 0.2
    %v494 = vmul.f32 %v492, 0.2
    %v495 = vmax.f32 %v491, %v493
    %v496 = vmax.f32 %v492, %v494
    %497 = vst [vmem:[#allocation7] sm:$0xff] %v495
    %498 = vst [vmem:[#allocation7 + $0x8] sm:$0xff] %v496
    // Predicated region
    $region26: #{tpu_custom_call.1} parent=1 // pred_check
      _
    $region27: #{tpu_custom_call.1} parent=1 // pred_check_branch
      %500 = sbr.rel (0) target = $region29
    $region28: #{tpu_custom_call.1} parent=1 // pred_region
      %s502 = ssub.s32 256, 256
      %503 = vsyncadd [#allocation4], %s502
      %s504 = sshll.u32 [#allocation7], 4
      %s505 = int_to_ptr.vmem [resolvable:$true] %s504
      %510 = dma.vmem_to_hbm [thread:$0]  %s505, 256, %s4, [#allocation4], 128, 128, 8
    $region29: #{tpu_custom_call.1} parent=1 // pred_fallthru
      _
    // Predicated region
    $region30: #{tpu_custom_call.1} parent=1 // pred_check
      _
    $region31: #{tpu_custom_call.1} parent=1 // pred_check_branch
      %512 = sbr.rel (0) target = $region33
    $region32: #{tpu_custom_call.1} parent=1 // pred_region
      %513 = dma.done [#allocation4], 256
    $region33: #{tpu_custom_call.1} parent=1 // pred_fallthru
      _
    %514 = vsyncpa [#allocation3], 1
    %515 = vsyncpa [#allocation6], 1
    %516 = vsyncpa [#allocation4], 1

</llo_original>
